<compile_context>
chip_gen: v7x
topology: tpu7x:2x2x1
jax: 0.10.0
libtpu: 0.0.40
codegen_flags: <defaults>
</compile_context>

<pallas_src>
import jax
import jax.numpy as jnp
from jax.experimental import pallas as pl
from jax.experimental.pallas import tpu as pltpu


_BATCH_TILE = 128                       # full 128-lane output rows (unmasked vst)
_VMEM_LIMIT_BYTES = 32 * 1024 * 1024    # safe on v5e/v6e (128 MiB) and v7x (64 MiB)
_RESIDENT_VMEM_BUDGET = 12 * 1024 * 1024


def _round_up(x, m):
    return (x + m - 1) // m * m


def _dot_exact_lhs(lhs_exact, rhs, dims):
    """dot_general where `lhs_exact` is exactly representable in bf16 (0/1
    one-hots, all-ones rows).  The f32 `rhs` is split into a bf16-exact hi part
    plus a small residual and reduced with two DEFAULT-precision MXU passes,
    keeping ~f32 accuracy without Precision.HIGHEST's 6-pass decomposition."""
    rhs_hi = rhs.astype(jnp.bfloat16).astype(jnp.float32)
    rhs_lo = rhs - rhs_hi
    acc = jax.lax.dot_general(lhs_exact, rhs_hi, dims,
                              preferred_element_type=jnp.float32)
    acc += jax.lax.dot_general(lhs_exact, rhs_lo, dims,
                               preferred_element_type=jnp.float32)
    return acc


def _glove_resident_kernel(c_idx_ref, s_idx_ref, cw_ref, sw_ref, out_ref):
    """Tables resident in VMEM; rows gathered with a one-hot MXU matmul."""
    V, daug = cw_ref.shape
    tb = out_ref.shape[1]

    cids = c_idx_ref[...]                                        # (tb, 1) i32
    sids = s_idx_ref[...]
    vocab_iota = jax.lax.broadcasted_iota(jnp.int32, (tb, V), 1)
    ohc = (vocab_iota == cids).astype(jnp.float32)               # (tb, V)
    ohs = (vocab_iota == sids).astype(jnp.float32)

    gather_dims = (((1,), (0,)), ((), ()))                       # (tb,V) @ (V,daug)
    cw_rows = _dot_exact_lhs(ohc, cw_ref[...], gather_dims)      # (tb, daug)
    sw_rows = _dot_exact_lhs(ohs, sw_ref[...], gather_dims)
    prod = cw_rows * sw_rows                                     # VPU, f32

    # Per-row reduce as ones(1,daug) @ prod^T on the MXU -> lane-dense (1, tb)
    # row, stored with a single unmasked vst.
    ones_row = jnp.ones((1, daug), jnp.float32)
    out_ref[...] = _dot_exact_lhs(ones_row, prod, (((1,), (1,)), ((), ())))


def _glove_gather_kernel(c_idx_ref, s_idx_ref, cw_hbm, sw_hbm, out_ref,
                         c_buf, s_buf, sems):
    """Tables stay in HBM; per-row DMA gather, double-buffered across tiles."""
    i = pl.program_id(0)
    nt = pl.num_programs(0)
    _, tb, daug = c_buf.shape

    def issue(tile, slot):
        base = tile * tb
        # NOTE: 2*tb small row descriptors per tile; if this ever backpressures
        # the DMA queues, chunk this loop (16-32 rows) — kept simple here since
        # the next tile's issue overlaps with this tile's compute/store anyway.
        for r in range(tb):
            pltpu.make_async_copy(cw_hbm.at[c_idx_ref[base + r]],
                                  c_buf.at[slot, r], sems.at[slot, 0]).start()
            pltpu.make_async_copy(sw_hbm.at[s_idx_ref[base + r]],
                                  s_buf.at[slot, r], sems.at[slot, 1]).start()

    # Prologue: prime tile 0 into slot 0.
    @pl.when(i == 0)
    def _():
        issue(0, 0)

    # Prefetch tile i+1 into the other slot before computing tile i, so the
    # row-gather DMA latency overlaps with this tile's compute + output store.
    nxt = jnp.minimum(i + 1, nt - 1)     # clamp keeps SMEM index reads in bounds
    @pl.when(i + 1 < nt)
    def _():
        issue(nxt, (i + 1) % 2)

    slot = i % 2
    # ONE aggregated wait per table: every row copy of this slot signals the
    # same semaphore with daug*4 bytes, so a single wait sized to the full
    # (tb, daug) slot drains all tb of them.  (The wrapper guarantees the HBM
    # table has >= tb rows so this descriptor is well formed.)
    pltpu.make_async_copy(cw_hbm.at[pl.ds(0, tb)], c_buf.at[slot],
                          sems.at[slot, 0]).wait()
    pltpu.make_async_copy(sw_hbm.at[pl.ds(0, tb)], s_buf.at[slot],
                          sems.at[slot, 1]).wait()

    prod = c_buf[slot] * s_buf[slot]                             # (tb, daug) f32
    ones_row = jnp.ones((1, daug), jnp.float32)
    out_ref[...] = _dot_exact_lhs(ones_row, prod, (((1,), (1,)), ((), ())))


def make_glove_tables(c_weight, c_biase, s_weight, s_biase):
    """Build the bias-augmented GloVe tables.  Call ONCE when the parameters
    are created/updated (hoisted out of the per-call forward: at real vocab
    sizes this is O(V*(D+2)) HBM traffic, far more than one forward reads).

        cw' = [c_w | c_b | 1],   sw' = [s_w | 1 | s_b]
        sum(cw'[c] * sw'[s], -1) == sum(c_w[c]*s_w[s], -1) + c_b[c] + s_b[s]
    """
    V, _ = c_weight.shape
    ones = jnp.ones((V, 1), jnp.float32)
    cw_aug = jnp.concatenate(
        [c_weight.astype(jnp.float32),
         c_biase.astype(jnp.float32).reshape(V, 1), ones], axis=1)
    sw_aug = jnp.concatenate(
        [s_weight.astype(jnp.float32), ones,
         s_biase.astype(jnp.float32).reshape(V, 1)], axis=1)
    return cw_aug, sw_aug


def _fits_resident(V, daug, tb):
    table = _round_up(V, 8) * _round_up(daug, 128) * 4
    onehots = 2 * tb * _round_up(V, 128) * 4
    rows = 6 * tb * _round_up(daug, 128) * 4
    # 2 tables x2 (pipeline buffering) + in-kernel temporaries, with headroom.
    return 2 * 2 * table + onehots + rows <= _RESIDENT_VMEM_BUDGET


def glove_forward(c, s, cw_aug, sw_aug, *, force_hbm_gather=False):
    """GloVe forward: (B,) int c, s -> (B, 1) f32 (matches the PyTorch module).
    `cw_aug` / `sw_aug` come from make_glove_tables (built once)."""
    V, daug = cw_aug.shape
    B = c.shape[0]

    # Batch tile fixed at 128 so every output block is a full, unmasked
    # 128-lane store.  Batches >= 256 give >= 2 grid tiles, so on v7x the
    # "parallel" axis shards across both TensorCores; for tiny batches the
    # kernel is ~1 us either way.
    tb = _BATCH_TILE
    b_pad = pl.cdiv(B, tb) * tb
    num_tiles = b_pad // tb

    def prep(idx):
        # TPU gathers / DMAs are not bounds checked (PyTorch would raise on an
        # out-of-range embedding index) -> clamp; pad the batch with index 0.
        idx = jnp.clip(idx.astype(jnp.int32), 0, V - 1)
        return jnp.pad(idx, (0, b_pad - B))

    c_idx = prep(c)
    s_idx = prep(s)

    if not force_hbm_gather and _fits_resident(V, daug, tb):
        # ---- Resident-table fast path: no per-row DMAs at all. ----
        out_row = pl.pallas_call(
            _glove_resident_kernel,
            out_shape=jax.ShapeDtypeStruct((1, b_pad), jnp.float32),
            grid_spec=pltpu.PrefetchScalarGridSpec(
                num_scalar_prefetch=0,
                grid=(num_tiles,),
                in_specs=[
                    pl.BlockSpec((tb, 1), lambda i: (i, 0)),     # c indices
                    pl.BlockSpec((tb, 1), lambda i: (i, 0)),     # s indices
                    pl.BlockSpec((V, daug), lambda i: (0, 0)),   # resident cw'
                    pl.BlockSpec((V, daug), lambda i: (0, 0)),   # resident sw'
                ],
                out_specs=pl.BlockSpec((1, tb), lambda i: (0, i))),
            compiler_params=pltpu.CompilerParams(
                dimension_semantics=("parallel",),
                vmem_limit_bytes=_VMEM_LIMIT_BYTES),
        )(c_idx.reshape(b_pad, 1), s_idx.reshape(b_pad, 1), cw_aug, sw_aug)
    else:
        # ---- HBM-gather path (vocab too large to keep resident in VMEM). ----
        if V < tb:
            # Degenerate (tiny vocab but gather path forced): pad with zero
            # rows so the aggregated-wait descriptor (an in-bounds (tb, daug)
            # HBM slice) is well formed.
            pad = jnp.zeros((tb - V, daug), jnp.float32)
            cw_aug = jnp.concatenate([cw_aug, pad], axis=0)
            sw_aug = jnp.concatenate([sw_aug, pad], axis=0)

        out_row = pl.pallas_call(
            _glove_gather_kernel,
            out_shape=jax.ShapeDtypeStruct((1, b_pad), jnp.float32),
            grid_spec=pltpu.PrefetchScalarGridSpec(
                num_scalar_prefetch=2,           # c_idx, s_idx -> SMEM
                grid=(num_tiles,),
                in_specs=[
                    pl.BlockSpec(memory_space=pl.ANY),   # cw' stays in HBM
                    pl.BlockSpec(memory_space=pl.ANY),   # sw' stays in HBM
                ],
                out_specs=pl.BlockSpec((1, tb), lambda i, c_r, s_r: (0, i)),
                scratch_shapes=[
                    pltpu.VMEM((2, tb, daug), jnp.float32),   # c rows, 2 slots
                    pltpu.VMEM((2, tb, daug), jnp.float32),   # s rows, 2 slots
                    pltpu.SemaphoreType.DMA((2, 2)),          # [slot, table]
                ]),
            compiler_params=pltpu.CompilerParams(
                # The double buffer + DMA semaphores carry state across grid
                # steps (tile i+1 is prefetched while tile i computes), so this
                # axis must run sequentially on one core.
                dimension_semantics=("arbitrary",),
                vmem_limit_bytes=_VMEM_LIMIT_BYTES),
        )(c_idx, s_idx, cw_aug, sw_aug)

    return out_row[0, :B].reshape(B, 1)


if __name__ == "__main__":
    key = jax.random.PRNGKey(0)
    k_cw, k_cb, k_sw, k_sb, k_c, k_s = jax.random.split(key, 6)

    vocab_size = 50   # len(vocab)
    embed_dim = 32    # args.embed_dim
    batch = 8

    # Deterministic parameter init mirroring torch.randn(...) / 100.
    c_weight = jax.random.normal(k_cw, (vocab_size, embed_dim), jnp.float32) / 100.0
    c_biase = jax.random.normal(k_cb, (vocab_size, 1), jnp.float32) / 100.0
    s_weight = jax.random.normal(k_sw, (vocab_size, embed_dim), jnp.float32) / 100.0
    s_biase = jax.random.normal(k_sb, (vocab_size, 1), jnp.float32) / 100.0

    c = jax.random.randint(k_c, (batch,), 0, vocab_size, jnp.int32)
    s = jax.random.randint(k_s, (batch,), 0, vocab_size, jnp.int32)

    # Augmented tables are built once, at parameter-creation time (hoisted out
    # of the per-call forward per the performance review).
    cw_aug, sw_aug = make_glove_tables(c_weight, c_biase, s_weight, s_biase)
    cw_aug, sw_aug = jax.block_until_ready((cw_aug, sw_aug))

    # Pure-JAX reference.
    ref = (jnp.sum(c_weight[c] * s_weight[s], axis=1, keepdims=True)
           + c_biase[c] + s_biase[s])

    # Resident-table fast path (tables fit VMEM at this size).
    out = jax.block_until_ready(glove_forward(c, s, cw_aug, sw_aug))
    assert out.shape == (batch, 1)
    assert jnp.allclose(out, ref, rtol=1e-4, atol=1e-5), (out, ref)

    # HBM-gather path (used for vocabularies too large for VMEM); forced here
    # at small shapes to exercise the double-buffered gather kernel too.
    out_g = jax.block_until_ready(
        glove_forward(c, s, cw_aug, sw_aug, force_hbm_gather=True))
    assert out_g.shape == (batch, 1)
    assert jnp.allclose(out_g, ref, rtol=1e-4, atol=1e-5), (out_g, ref)

    print("KERNEL_OK")
</pallas_src>

<mosaic_0001>
module attributes {stable_mosaic.version = 11 : i64} {
  func.func @_glove_resident_kernel(%arg0: i32, %arg1: memref<128x1xi32, #tpu.memory_space<vmem>>, %arg2: memref<128x1xi32, #tpu.memory_space<vmem>>, %arg3: memref<50x34xf32, #tpu.memory_space<vmem>>, %arg4: memref<50x34xf32, #tpu.memory_space<vmem>>, %arg5: memref<1x128xf32, #tpu.memory_space<vmem>>) attributes {dimension_semantics = [#tpu.dimension_semantics<parallel>], iteration_bounds = array<i64: 1>, scalar_prefetch = 0 : i64, scratch_operands = 0 : i64, tpu.core_type = #tpu.core_type<tc>, window_params = [{transform_indices = @transform_0, window_bounds = array<i64: 128, 1>}, {transform_indices = @transform_1, window_bounds = array<i64: 128, 1>}, {pipeline_mode = #tpu.pipeline_mode<synchronous>, transform_indices = @transform_2, window_bounds = array<i64: 50, 34>}, {pipeline_mode = #tpu.pipeline_mode<synchronous>, transform_indices = @transform_3, window_bounds = array<i64: 50, 34>}, {transform_indices = @transform_4, window_bounds = array<i64: 1, 128>}]} {
    %c0 = arith.constant 0 : index
    %c0_0 = arith.constant 0 : index
    %0 = vector.load %arg1[%c0, %c0_0] : memref<128x1xi32, #tpu.memory_space<vmem>>, vector<128x1xi32>
    %c0_1 = arith.constant 0 : index
    %c0_2 = arith.constant 0 : index
    %1 = vector.load %arg2[%c0_1, %c0_2] : memref<128x1xi32, #tpu.memory_space<vmem>>, vector<128x1xi32>
    %2 = tpu.iota {dimensions = array<i32: 1>} : vector<128x50xi32>
    %3 = vector.broadcast %0 : vector<128x1xi32> to vector<128x50xi32>
    %4 = arith.cmpi eq, %2, %3 : vector<128x50xi32>
    %5 = arith.extui %4 : vector<128x50xi1> to vector<128x50xi32>
    %6 = arith.sitofp %5 : vector<128x50xi32> to vector<128x50xf32>
    %7 = vector.broadcast %1 : vector<128x1xi32> to vector<128x50xi32>
    %8 = arith.cmpi eq, %2, %7 : vector<128x50xi32>
    %9 = arith.extui %8 : vector<128x50xi1> to vector<128x50xi32>
    %10 = arith.sitofp %9 : vector<128x50xi32> to vector<128x50xf32>
    %c0_3 = arith.constant 0 : index
    %c0_4 = arith.constant 0 : index
    %11 = vector.load %arg3[%c0_3, %c0_4] : memref<50x34xf32, #tpu.memory_space<vmem>>, vector<50x34xf32>
    %12 = arith.truncf %11 : vector<50x34xf32> to vector<50x34xbf16>
    %13 = arith.extf %12 : vector<50x34xbf16> to vector<50x34xf32>
    %14 = arith.subf %11, %13 : vector<50x34xf32>
    %cst = arith.constant dense<0.000000e+00> : vector<128x34xf32>
    %15 = tpu.matmul %6, %13, %cst {dimension_numbers = #tpu.dot_dimension_numbers<[1], [0], [0], [1], [0, 0, 1, 1], [], []>} : vector<128x50xf32>, vector<50x34xf32>, vector<128x34xf32> -> vector<128x34xf32>
    %cst_5 = arith.constant dense<0.000000e+00> : vector<128x34xf32>
    %16 = tpu.matmul %6, %14, %cst_5 {dimension_numbers = #tpu.dot_dimension_numbers<[1], [0], [0], [1], [0, 0, 1, 1], [], []>} : vector<128x50xf32>, vector<50x34xf32>, vector<128x34xf32> -> vector<128x34xf32>
    %17 = arith.addf %15, %16 : vector<128x34xf32>
    %c0_6 = arith.constant 0 : index
    %c0_7 = arith.constant 0 : index
    %18 = vector.load %arg4[%c0_6, %c0_7] : memref<50x34xf32, #tpu.memory_space<vmem>>, vector<50x34xf32>
    %19 = arith.truncf %18 : vector<50x34xf32> to vector<50x34xbf16>
    %20 = arith.extf %19 : vector<50x34xbf16> to vector<50x34xf32>
    %21 = arith.subf %18, %20 : vector<50x34xf32>
    %cst_8 = arith.constant dense<0.000000e+00> : vector<128x34xf32>
    %22 = tpu.matmul %10, %20, %cst_8 {dimension_numbers = #tpu.dot_dimension_numbers<[1], [0], [0], [1], [0, 0, 1, 1], [], []>} : vector<128x50xf32>, vector<50x34xf32>, vector<128x34xf32> -> vector<128x34xf32>
    %cst_9 = arith.constant dense<0.000000e+00> : vector<128x34xf32>
    %23 = tpu.matmul %10, %21, %cst_9 {dimension_numbers = #tpu.dot_dimension_numbers<[1], [0], [0], [1], [0, 0, 1, 1], [], []>} : vector<128x50xf32>, vector<50x34xf32>, vector<128x34xf32> -> vector<128x34xf32>
    %24 = arith.addf %22, %23 : vector<128x34xf32>
    %25 = arith.mulf %17, %24 : vector<128x34xf32>
    %cst_10 = arith.constant 1.000000e+00 : f32
    %26 = vector.broadcast %cst_10 : f32 to vector<1x34xf32>
    %27 = arith.truncf %25 : vector<128x34xf32> to vector<128x34xbf16>
    %28 = arith.extf %27 : vector<128x34xbf16> to vector<128x34xf32>
    %29 = arith.subf %25, %28 : vector<128x34xf32>
    %cst_11 = arith.constant dense<0.000000e+00> : vector<1x128xf32>
    %30 = tpu.matmul %26, %28, %cst_11 {dimension_numbers = #tpu.dot_dimension_numbers<[1], [1], [0], [0], [0, 0, 1, 0], [], []>} : vector<1x34xf32>, vector<128x34xf32>, vector<1x128xf32> -> vector<1x128xf32>
    %cst_12 = arith.constant dense<0.000000e+00> : vector<1x128xf32>
    %31 = tpu.matmul %26, %29, %cst_12 {dimension_numbers = #tpu.dot_dimension_numbers<[1], [1], [0], [0], [0, 0, 1, 0], [], []>} : vector<1x34xf32>, vector<128x34xf32>, vector<1x128xf32> -> vector<1x128xf32>
    %32 = arith.addf %30, %31 : vector<1x128xf32>
    %c0_13 = arith.constant 0 : index
    %c0_14 = arith.constant 0 : index
    %33 = vector.load %arg5[%c0_13, %c0_14] : memref<1x128xf32, #tpu.memory_space<vmem>>, vector<1x128xf32>
    tpu.vector_store %arg5[%c0_13, %c0_14], %32 {strides = array<i32>} : memref<1x128xf32, #tpu.memory_space<vmem>>, vector<1x128xf32>,
    return
  }
  func.func @transform_0(%arg0: i32) -> (i32, i32) {
    %c0_i32 = arith.constant 0 : i32
    %c0_i32_0 = arith.constant 0 : i32
    return %arg0, %c0_i32 : i32, i32
  }
  func.func @transform_1(%arg0: i32) -> (i32, i32) {
    %c0_i32 = arith.constant 0 : i32
    %c0_i32_0 = arith.constant 0 : i32
    return %arg0, %c0_i32 : i32, i32
  }
  func.func @transform_2(%arg0: i32) -> (i32, i32) {
    %c0_i32 = arith.constant 0 : i32
    %c0_i32_0 = arith.constant 0 : i32
    %c0_i32_1 = arith.constant 0 : i32
    return %c0_i32, %c0_i32_0 : i32, i32
  }
  func.func @transform_3(%arg0: i32) -> (i32, i32) {
    %c0_i32 = arith.constant 0 : i32
    %c0_i32_0 = arith.constant 0 : i32
    %c0_i32_1 = arith.constant 0 : i32
    return %c0_i32, %c0_i32_0 : i32, i32
  }
  func.func @transform_4(%arg0: i32) -> (i32, i32) {
    %c0_i32 = arith.constant 0 : i32
    %c0_i32_0 = arith.constant 0 : i32
    return %c0_i32, %arg0 : i32, i32
  }
}

</mosaic_0001>

<llo_original>
// kernel: tpu_custom_call.1
$region0: #{tpu_custom_call.1}
  #allocation0 [shape = 'u32[]', space=smem, size = 0x4, offset = 0x4, fixed_abs, tag = 'smem constant byte address 0x4 - core index']
  #allocation1 [shape = 'u32[144,128]{1,0:T(1,128)}', space=vmem, size = 0x12000, scoped, tag = 'internal scratch']
  %s0 = inlined_call_operand.vmem [shape: s32[128,1], index: 0, kind: input, shape index: {}]
  %s1 = inlined_call_operand.vmem [shape: s32[128,1], index: 1, kind: input, shape index: {}]
  %s2 = inlined_call_operand.vmem [shape: f32[50,34], index: 2, kind: input, shape index: {}]
  %s3 = inlined_call_operand.vmem [shape: f32[50,34], index: 3, kind: input, shape index: {}]
  %s4 = inlined_call_operand.hbm [shape: f32[1,128], index: 4, kind: output, shape index: {}]
  %s5 = sld [smem:[#allocation0]]
  $region26: #{tpu_custom_call.1} parent=0
    _
  %s7 = ssub.s32 1, %s5
  %s8 = scalar_select 0, %s7, %s5
  $region1: #{tpu_custom_call.1} parent=0
    #allocation2 [shape = 'u8[512]{0}', space=vmem, size = 0x400, scoped, tag = 'output window, operand 0, single buffered']
    #allocation3 [shape = 's32[1]{0}', space=sflag, size = 0x4, scoped, tag = 'scoped memory for tpu_custom_call.1']
    %9 = vsyncpa [#allocation3], 0
    // Predicated region
    $region2: #{tpu_custom_call.1} parent=1 // pred_check
      _
    $region3: #{tpu_custom_call.1} parent=1 // pred_check_branch
      %11 = sbr.rel (0) target = $region5
    $region4: #{tpu_custom_call.1} parent=1 // pred_region
      _
    $region5: #{tpu_custom_call.1} parent=1 // pred_fallthru
      _
    // Predicated region
    $region6: #{tpu_custom_call.1} parent=1 // pred_check
      _
    $region7: #{tpu_custom_call.1} parent=1 // pred_check_branch
      %13 = sbr.rel (0) target = $region9
    $region8: #{tpu_custom_call.1} parent=1 // pred_region
      _
    $region9: #{tpu_custom_call.1} parent=1 // pred_fallthru
      _
    // Predicated region
    $region10: #{tpu_custom_call.1} parent=1 // pred_check
      _
    $region11: #{tpu_custom_call.1} parent=1 // pred_check_branch
      %15 = sbr.rel (0) target = $region13
    $region12: #{tpu_custom_call.1} parent=1 // pred_region
      _
    $region13: #{tpu_custom_call.1} parent=1 // pred_fallthru
      _
    // Predicated region
    $region14: #{tpu_custom_call.1} parent=1 // pred_check
      _
    $region15: #{tpu_custom_call.1} parent=1 // pred_check_branch
      %17 = sbr.rel (0) target = $region17
    $region16: #{tpu_custom_call.1} parent=1 // pred_region
      _
    $region17: #{tpu_custom_call.1} parent=1 // pred_fallthru
      _
    %v18 = vld [vmem:[%s0] sm:$0xff]
    %v19 = vld [vmem:[%s0 + $0x8] sm:$0xff]
    %v20 = vld [vmem:[%s0 + $0x10] sm:$0xff]
    %v21 = vld [vmem:[%s0 + $0x18] sm:$0xff]
    %v22 = vld [vmem:[%s0 + $0x20] sm:$0xff]
    %v23 = vld [vmem:[%s0 + $0x28] sm:$0xff]
    %v24 = vld [vmem:[%s0 + $0x30] sm:$0xff]
    %v25 = vld [vmem:[%s0 + $0x38] sm:$0xff]
    %v26 = vld [vmem:[%s0 + $0x40] sm:$0xff]
    %v27 = vld [vmem:[%s0 + $0x48] sm:$0xff]
    %v28 = vld [vmem:[%s0 + $0x50] sm:$0xff]
    %v29 = vld [vmem:[%s0 + $0x58] sm:$0xff]
    %v30 = vld [vmem:[%s0 + $0x60] sm:$0xff]
    %v31 = vld [vmem:[%s0 + $0x68] sm:$0xff]
    %v32 = vld [vmem:[%s0 + $0x70] sm:$0xff]
    %v33 = vld [vmem:[%s0 + $0x78] sm:$0xff]
    %v34 = vld [vmem:[%s1] sm:$0xff]
    %v35 = vld [vmem:[%s1 + $0x8] sm:$0xff]
    %v36 = vld [vmem:[%s1 + $0x10] sm:$0xff]
    %v37 = vld [vmem:[%s1 + $0x18] sm:$0xff]
    %v38 = vld [vmem:[%s1 + $0x20] sm:$0xff]
    %v39 = vld [vmem:[%s1 + $0x28] sm:$0xff]
    %v40 = vld [vmem:[%s1 + $0x30] sm:$0xff]
    %v41 = vld [vmem:[%s1 + $0x38] sm:$0xff]
    %v42 = vld [vmem:[%s1 + $0x40] sm:$0xff]
    %v43 = vld [vmem:[%s1 + $0x48] sm:$0xff]
    %v44 = vld [vmem:[%s1 + $0x50] sm:$0xff]
    %v45 = vld [vmem:[%s1 + $0x58] sm:$0xff]
    %v46 = vld [vmem:[%s1 + $0x60] sm:$0xff]
    %v47 = vld [vmem:[%s1 + $0x68] sm:$0xff]
    %v48 = vld [vmem:[%s1 + $0x70] sm:$0xff]
    %v49 = vld [vmem:[%s1 + $0x78] sm:$0xff]
    %v50 = vlaneseq
    %v51 = vand.u32 %v50, 127
    %52 = vset.pattern.permute.xlu0 0
    %53 = vperm.xlu0 %52, %v18
    %v54 = vpop.permute.xlu0 %53
    %55 = vset.pattern.permute.xlu0 0
    %56 = vperm.xlu0 %55, %v19
    %v57 = vpop.permute.xlu0 %56
    %58 = vset.pattern.permute.xlu0 0
    %59 = vperm.xlu0 %58, %v20
    %v60 = vpop.permute.xlu0 %59
    %61 = vset.pattern.permute.xlu0 0
    %62 = vperm.xlu0 %61, %v21
    %v63 = vpop.permute.xlu0 %62
    %64 = vset.pattern.permute.xlu0 0
    %65 = vperm.xlu0 %64, %v22
    %v66 = vpop.permute.xlu0 %65
    %67 = vset.pattern.permute.xlu0 0
    %68 = vperm.xlu0 %67, %v23
    %v69 = vpop.permute.xlu0 %68
    %70 = vset.pattern.permute.xlu0 0
    %71 = vperm.xlu0 %70, %v24
    %v72 = vpop.permute.xlu0 %71
    %73 = vset.pattern.permute.xlu0 0
    %74 = vperm.xlu0 %73, %v25
    %v75 = vpop.permute.xlu0 %74
    %76 = vset.pattern.permute.xlu0 0
    %77 = vperm.xlu0 %76, %v26
    %v78 = vpop.permute.xlu0 %77
    %79 = vset.pattern.permute.xlu0 0
    %80 = vperm.xlu0 %79, %v27
    %v81 = vpop.permute.xlu0 %80
    %82 = vset.pattern.permute.xlu0 0
    %83 = vperm.xlu0 %82, %v28
    %v84 = vpop.permute.xlu0 %83
    %85 = vset.pattern.permute.xlu0 0
    %86 = vperm.xlu0 %85, %v29
    %v87 = vpop.permute.xlu0 %86
    %88 = vset.pattern.permute.xlu0 0
    %89 = vperm.xlu0 %88, %v30
    %v90 = vpop.permute.xlu0 %89
    %91 = vset.pattern.permute.xlu0 0
    %92 = vperm.xlu0 %91, %v31
    %v93 = vpop.permute.xlu0 %92
    %94 = vset.pattern.permute.xlu0 0
    %95 = vperm.xlu0 %94, %v32
    %v96 = vpop.permute.xlu0 %95
    %97 = vset.pattern.permute.xlu0 0
    %98 = vperm.xlu0 %97, %v33
    %v99 = vpop.permute.xlu0 %98
    %vm100 = vcmp.eq.s32.totalorder %v51, %v54
    %vm101 = vcmp.eq.s32.totalorder %v51, %v57
    %vm102 = vcmp.eq.s32.totalorder %v51, %v60
    %vm103 = vcmp.eq.s32.totalorder %v51, %v63
    %vm104 = vcmp.eq.s32.totalorder %v51, %v66
    %vm105 = vcmp.eq.s32.totalorder %v51, %v69
    %vm106 = vcmp.eq.s32.totalorder %v51, %v72
    %vm107 = vcmp.eq.s32.totalorder %v51, %v75
    %vm108 = vcmp.eq.s32.totalorder %v51, %v78
    %vm109 = vcmp.eq.s32.totalorder %v51, %v81
    %vm110 = vcmp.eq.s32.totalorder %v51, %v84
    %vm111 = vcmp.eq.s32.totalorder %v51, %v87
    %vm112 = vcmp.eq.s32.totalorder %v51, %v90
    %vm113 = vcmp.eq.s32.totalorder %v51, %v93
    %vm114 = vcmp.eq.s32.totalorder %v51, %v96
    %vm115 = vcmp.eq.s32.totalorder %v51, %v99
    %v116 = vsel %vm100, 1, 0
    %v117 = vsel %vm101, 1, 0
    %v118 = vsel %vm102, 1, 0
    %v119 = vsel %vm103, 1, 0
    %v120 = vsel %vm104, 1, 0
    %v121 = vsel %vm105, 1, 0
    %v122 = vsel %vm106, 1, 0
    %v123 = vsel %vm107, 1, 0
    %v124 = vsel %vm108, 1, 0
    %v125 = vsel %vm109, 1, 0
    %v126 = vsel %vm110, 1, 0
    %v127 = vsel %vm111, 1, 0
    %v128 = vsel %vm112, 1, 0
    %v129 = vsel %vm113, 1, 0
    %v130 = vsel %vm114, 1, 0
    %v131 = vsel %vm115, 1, 0
    %v132 = vcvt.s32.f32 %v116
    %v133 = vcvt.s32.f32 %v117
    %v134 = vcvt.s32.f32 %v118
    %v135 = vcvt.s32.f32 %v119
    %v136 = vcvt.s32.f32 %v120
    %v137 = vcvt.s32.f32 %v121
    %v138 = vcvt.s32.f32 %v122
    %v139 = vcvt.s32.f32 %v123
    %v140 = vcvt.s32.f32 %v124
    %v141 = vcvt.s32.f32 %v125
    %v142 = vcvt.s32.f32 %v126
    %v143 = vcvt.s32.f32 %v127
    %v144 = vcvt.s32.f32 %v128
    %v145 = vcvt.s32.f32 %v129
    %v146 = vcvt.s32.f32 %v130
    %v147 = vcvt.s32.f32 %v131
    %148 = vset.pattern.permute.xlu0 0
    %149 = vperm.xlu0 %148, %v34
    %v150 = vpop.permute.xlu0 %149
    %151 = vset.pattern.permute.xlu0 0
    %152 = vperm.xlu0 %151, %v35
    %v153 = vpop.permute.xlu0 %152
    %154 = vset.pattern.permute.xlu0 0
    %155 = vperm.xlu0 %154, %v36
    %v156 = vpop.permute.xlu0 %155
    %157 = vset.pattern.permute.xlu0 0
    %158 = vperm.xlu0 %157, %v37
    %v159 = vpop.permute.xlu0 %158
    %160 = vset.pattern.permute.xlu0 0
    %161 = vperm.xlu0 %160, %v38
    %v162 = vpop.permute.xlu0 %161
    %163 = vset.pattern.permute.xlu0 0
    %164 = vperm.xlu0 %163, %v39
    %v165 = vpop.permute.xlu0 %164
    %166 = vset.pattern.permute.xlu0 0
    %167 = vperm.xlu0 %166, %v40
    %v168 = vpop.permute.xlu0 %167
    %169 = vset.pattern.permute.xlu0 0
    %170 = vperm.xlu0 %169, %v41
    %v171 = vpop.permute.xlu0 %170
    %172 = vset.pattern.permute.xlu0 0
    %173 = vperm.xlu0 %172, %v42
    %v174 = vpop.permute.xlu0 %173
    %175 = vset.pattern.permute.xlu0 0
    %176 = vperm.xlu0 %175, %v43
    %v177 = vpop.permute.xlu0 %176
    %178 = vset.pattern.permute.xlu0 0
    %179 = vperm.xlu0 %178, %v44
    %v180 = vpop.permute.xlu0 %179
    %181 = vset.pattern.permute.xlu0 0
    %182 = vperm.xlu0 %181, %v45
    %v183 = vpop.permute.xlu0 %182
    %184 = vset.pattern.permute.xlu0 0
    %185 = vperm.xlu0 %184, %v46
    %v186 = vpop.permute.xlu0 %185
    %187 = vset.pattern.permute.xlu0 0
    %188 = vperm.xlu0 %187, %v47
    %v189 = vpop.permute.xlu0 %188
    %190 = vset.pattern.permute.xlu0 0
    %191 = vperm.xlu0 %190, %v48
    %v192 = vpop.permute.xlu0 %191
    %193 = vset.pattern.permute.xlu0 0
    %194 = vperm.xlu0 %193, %v49
    %v195 = vpop.permute.xlu0 %194
    %vm196 = vcmp.eq.s32.totalorder %v51, %v150
    %vm197 = vcmp.eq.s32.totalorder %v51, %v153
    %vm198 = vcmp.eq.s32.totalorder %v51, %v156
    %vm199 = vcmp.eq.s32.totalorder %v51, %v159
    %vm200 = vcmp.eq.s32.totalorder %v51, %v162
    %vm201 = vcmp.eq.s32.totalorder %v51, %v165
    %vm202 = vcmp.eq.s32.totalorder %v51, %v168
    %vm203 = vcmp.eq.s32.totalorder %v51, %v171
    %vm204 = vcmp.eq.s32.totalorder %v51, %v174
    %vm205 = vcmp.eq.s32.totalorder %v51, %v177
    %vm206 = vcmp.eq.s32.totalorder %v51, %v180
    %vm207 = vcmp.eq.s32.totalorder %v51, %v183
    %vm208 = vcmp.eq.s32.totalorder %v51, %v186
    %vm209 = vcmp.eq.s32.totalorder %v51, %v189
    %vm210 = vcmp.eq.s32.totalorder %v51, %v192
    %vm211 = vcmp.eq.s32.totalorder %v51, %v195
    %v212 = vsel %vm196, 1, 0
    %v213 = vsel %vm197, 1, 0
    %v214 = vsel %vm198, 1, 0
    %v215 = vsel %vm199, 1, 0
    %v216 = vsel %vm200, 1, 0
    %v217 = vsel %vm201, 1, 0
    %v218 = vsel %vm202, 1, 0
    %v219 = vsel %vm203, 1, 0
    %v220 = vsel %vm204, 1, 0
    %v221 = vsel %vm205, 1, 0
    %v222 = vsel %vm206, 1, 0
    %v223 = vsel %vm207, 1, 0
    %v224 = vsel %vm208, 1, 0
    %v225 = vsel %vm209, 1, 0
    %v226 = vsel %vm210, 1, 0
    %v227 = vsel %vm211, 1, 0
    %v228 = vcvt.s32.f32 %v212
    %v229 = vcvt.s32.f32 %v213
    %v230 = vcvt.s32.f32 %v214
    %v231 = vcvt.s32.f32 %v215
    %v232 = vcvt.s32.f32 %v216
    %v233 = vcvt.s32.f32 %v217
    %v234 = vcvt.s32.f32 %v218
    %v235 = vcvt.s32.f32 %v219
    %v236 = vcvt.s32.f32 %v220
    %v237 = vcvt.s32.f32 %v221
    %v238 = vcvt.s32.f32 %v222
    %v239 = vcvt.s32.f32 %v223
    %v240 = vcvt.s32.f32 %v224
    %v241 = vcvt.s32.f32 %v225
    %v242 = vcvt.s32.f32 %v226
    %v243 = vcvt.s32.f32 %v227
    %v244 = vld [vmem:[%s2] sm:$0xff]
    %v245 = vld [vmem:[%s2 + $0x8] sm:$0xff]
    %v246 = vld [vmem:[%s2 + $0x10] sm:$0xff]
    %v247 = vld [vmem:[%s2 + $0x18] sm:$0xff]
    %v248 = vld [vmem:[%s2 + $0x20] sm:$0xff]
    %v249 = vld [vmem:[%s2 + $0x28] sm:$0xff]
    %v250 = vld [vmem:[%s2 + $0x30] sm:$0x3]
    %v251 = vpack.c.bf16 %v245, %v244
    %v252 = vpack.c.bf16 %v247, %v246
    %v253 = vpack.c.bf16 %v249, %v248
    %v254 = vpack.c.bf16 %v250, %v250
    %v255 = vunpack.c.l.bf16 %v251
    %v256 = vunpack.c.h.bf16 %v251
    %v257 = vunpack.c.l.bf16 %v252
    %v258 = vunpack.c.h.bf16 %v252
    %v259 = vunpack.c.l.bf16 %v253
    %v260 = vunpack.c.h.bf16 %v253
    %v261 = vunpack.c.l.bf16 %v254
    %v262 = vsub.f32 %v244, %v255
    %v263 = vsub.f32 %v245, %v256
    %v264 = vsub.f32 %v246, %v257
    %v265 = vsub.f32 %v247, %v258
    %v266 = vsub.f32 %v248, %v259
    %v267 = vsub.f32 %v249, %v260
    %v268 = vsub.f32 %v250, %v261
    %vm269 = vcmask 408576
    %v271 = vsel %vm269, %v132, 0
    %v274 = vsel %vm269, %v133, 0
    %v277 = vsel %vm269, %v134, 0
    %v280 = vsel %vm269, %v135, 0
    %v283 = vsel %vm269, %v136, 0
    %v286 = vsel %vm269, %v137, 0
    %v289 = vsel %vm269, %v138, 0
    %v292 = vsel %vm269, %v139, 0
    %v295 = vsel %vm269, %v140, 0
    %v298 = vsel %vm269, %v141, 0
    %v301 = vsel %vm269, %v142, 0
    %v304 = vsel %vm269, %v143, 0
    %v307 = vsel %vm269, %v144, 0
    %v310 = vsel %vm269, %v145, 0
    %v313 = vsel %vm269, %v146, 0
    %v316 = vsel %vm269, %v147, 0
    %vm318 = vcmask 1041408
    %v320 = vsel %vm318, %v268, 0
    %322 = vmatprep.subr.mxu0 0.0
    %323 = vmatpush1.msra.mxu0 %v262
    %324 = vmatprep.subr.mxu0 0.0
    %325 = vmatpush1.msra.mxu0 %v263
    %326 = vmatprep.subr.mxu0 0.0
    %327 = vmatpush1.msra.mxu0 %v264
    %328 = vmatprep.subr.mxu0 0.0
    %329 = vmatpush1.msra.mxu0 %v265
    %330 = vmatprep.subr.mxu0 0.0
    %331 = vmatpush1.msra.mxu0 %v266
    %332 = vmatprep.subr.mxu0 0.0
    %333 = vmatpush1.msra.mxu0 %v267
    %334 = vmatprep.subr.mxu0 0.0
    %335 = vmatpush1.msra.mxu0 %v320
    %336 = vmatprep.subr.mxu0 0.0
    %337 = vmatpush1.msra.mxu0 0.0
    %338 = vmatprep.subr.mxu0 0.0
    %339 = vmatpush1.msra.mxu0 0.0
    %340 = vmatprep.subr.mxu0 0.0
    %341 = vmatpush1.msra.mxu0 0.0
    %342 = vmatprep.subr.mxu0 0.0
    %343 = vmatpush1.msra.mxu0 0.0
    %344 = vmatprep.subr.mxu0 0.0
    %345 = vmatpush1.msra.mxu0 0.0
    %346 = vmatprep.subr.mxu0 0.0
    %347 = vmatpush1.msra.mxu0 0.0
    %348 = vmatprep.subr.mxu0 0.0
    %349 = vmatpush1.msra.mxu0 0.0
    %350 = vmatprep.subr.mxu0 0.0
    %351 = vmatpush1.msra.mxu0 0.0
    %352 = vmatprep.subr.mxu0 0.0
    %353 = vmatpush1.msra.mxu0 0.0
    %354 = vmatprep.subr.mxu0 0.0
    %355 = vmatpush1.msra.mxu0 0.0
    %356 = vmatprep.subr.mxu0 0.0
    %357 = vmatpush1.msra.mxu0 0.0
    %358 = vmatprep.subr.mxu0 0.0
    %359 = vmatpush1.msra.mxu0 0.0
    %360 = vmatprep.subr.mxu0 0.0
    %361 = vmatpush1.msra.mxu0 0.0
    %362 = vmatprep.subr.mxu0 0.0
    %363 = vmatpush1.msra.mxu0 0.0
    %364 = vmatprep.subr.mxu0 0.0
    %365 = vmatpush1.msra.mxu0 0.0
    %366 = vmatprep.subr.mxu0 0.0
    %367 = vmatpush1.msra.mxu0 0.0
    %368 = vmatprep.subr.mxu0 0.0
    %369 = vmatpush1.msra.mxu0 0.0
    %370 = vmatprep.subr.mxu0 0.0
    %371 = vmatpush1.msra.mxu0 0.0
    %372 = vmatprep.subr.mxu0 0.0
    %373 = vmatpush1.msra.mxu0 0.0
    %374 = vmatprep.subr.mxu0 0.0
    %375 = vmatpush1.msra.mxu0 0.0
    %376 = vmatprep.subr.mxu0 0.0
    %377 = vmatpush1.msra.mxu0 0.0
    %378 = vmatprep.subr.mxu0 0.0
    %379 = vmatpush1.msra.mxu0 0.0
    %380 = vmatprep.subr.mxu0 0.0
    %381 = vmatpush1.msra.mxu0 0.0
    %382 = vmatprep.subr.mxu0 0.0
    %383 = vmatpush1.msra.mxu0 0.0
    %384 = vmatprep.subr.mxu0 0.0
    %385 = vmatpush1.msra.mxu0 0.0
    %386 = vmatprep.mubr.f32.mxu0 0.0
    %387 = vmatmul.mubr.f32.gmra.mrb[0].mxu0 %v271
    %v388 = vpop.f32.mrb[0].mxu0
    %v389 = vadd.f32 0.0, %v388
    %v390 = vpop.f32.mrb[0].mxu0
    %391 = vmatprep.mubr.f32.mxu0 0.0
    %392 = vmatmul.mubr.f32.gmra.mrb[0].mxu0 %v274
    %v393 = vpop.f32.mrb[0].mxu0
    %v394 = vadd.f32 0.0, %v393
    %v395 = vpop.f32.mrb[0].mxu0
    %396 = vmatprep.mubr.f32.mxu0 0.0
    %397 = vmatmul.mubr.f32.gmra.mrb[0].mxu0 %v277
    %v398 = vpop.f32.mrb[0].mxu0
    %v399 = vadd.f32 0.0, %v398
    %v400 = vpop.f32.mrb[0].mxu0
    %401 = vmatprep.mubr.f32.mxu0 0.0
    %402 = vmatmul.mubr.f32.gmra.mrb[0].mxu0 %v280
    %v403 = vpop.f32.mrb[0].mxu0
    %v404 = vadd.f32 0.0, %v403
    %v405 = vpop.f32.mrb[0].mxu0
    %406 = vmatprep.mubr.f32.mxu0 0.0
    %407 = vmatmul.mubr.f32.gmra.mrb[0].mxu0 %v283
    %v408 = vpop.f32.mrb[0].mxu0
    %v409 = vadd.f32 0.0, %v408
    %v410 = vpop.f32.mrb[0].mxu0
    %411 = vmatprep.mubr.f32.mxu0 0.0
    %412 = vmatmul.mubr.f32.gmra.mrb[0].mxu0 %v286
    %v413 = vpop.f32.mrb[0].mxu0
    %v414 = vadd.f32 0.0, %v413
    %v415 = vpop.f32.mrb[0].mxu0
    %416 = vmatprep.mubr.f32.mxu0 0.0
    %417 = vmatmul.mubr.f32.gmra.mrb[0].mxu0 %v289
    %v418 = vpop.f32.mrb[0].mxu0
    %v419 = vadd.f32 0.0, %v418
    %v420 = vpop.f32.mrb[0].mxu0
    %421 = vmatprep.mubr.f32.mxu0 0.0
    %422 = vmatmul.mubr.f32.gmra.mrb[0].mxu0 %v292
    %v423 = vpop.f32.mrb[0].mxu0
    %v424 = vadd.f32 0.0, %v423
    %v425 = vpop.f32.mrb[0].mxu0
    %426 = vmatprep.mubr.f32.mxu0 0.0
    %427 = vmatmul.mubr.f32.gmra.mrb[0].mxu0 %v295
    %v428 = vpop.f32.mrb[0].mxu0
    %v429 = vadd.f32 0.0, %v428
    %v430 = vpop.f32.mrb[0].mxu0
    %431 = vmatprep.mubr.f32.mxu0 0.0
    %432 = vmatmul.mubr.f32.gmra.mrb[0].mxu0 %v298
    %v433 = vpop.f32.mrb[0].mxu0
    %v434 = vadd.f32 0.0, %v433
    %v435 = vpop.f32.mrb[0].mxu0
    %436 = vmatprep.mubr.f32.mxu0 0.0
    %437 = vmatmul.mubr.f32.gmra.mrb[0].mxu0 %v301
    %v438 = vpop.f32.mrb[0].mxu0
    %v439 = vadd.f32 0.0, %v438
    %v440 = vpop.f32.mrb[0].mxu0
    %441 = vmatprep.mubr.f32.mxu0 0.0
    %442 = vmatmul.mubr.f32.gmra.mrb[0].mxu0 %v304
    %v443 = vpop.f32.mrb[0].mxu0
    %v444 = vadd.f32 0.0, %v443
    %v445 = vpop.f32.mrb[0].mxu0
    %446 = vmatprep.mubr.f32.mxu0 0.0
    %447 = vmatmul.mubr.f32.gmra.mrb[0].mxu0 %v307
    %v448 = vpop.f32.mrb[0].mxu0
    %v449 = vadd.f32 0.0, %v448
    %v450 = vpop.f32.mrb[0].mxu0
    %451 = vmatprep.mubr.f32.mxu0 0.0
    %452 = vmatmul.mubr.f32.gmra.mrb[0].mxu0 %v310
    %v453 = vpop.f32.mrb[0].mxu0
    %v454 = vadd.f32 0.0, %v453
    %v455 = vpop.f32.mrb[0].mxu0
    %456 = vmatprep.mubr.f32.mxu0 0.0
    %457 = vmatmul.mubr.f32.gmra.mrb[0].mxu0 %v313
    %v458 = vpop.f32.mrb[0].mxu0
    %v459 = vadd.f32 0.0, %v458
    %v460 = vpop.f32.mrb[0].mxu0
    %461 = vmatprep.mubr.f32.mxu0 0.0
    %462 = vmatmul.mubr.f32.gmra.mrb[0].mxu0 %v316
    %v463 = vpop.f32.mrb[0].mxu0
    %v464 = vadd.f32 0.0, %v463
    %v465 = vpop.f32.mrb[0].mxu0
    %466 = vdwg.mxu0
    %v468 = vsel %vm318, %v261, 0
    %470 = vmatprep.subr.mxu0 0.0
    %471 = vmatpush1.msra.mxu0 %v255
    %472 = vmatprep.subr.mxu0 0.0
    %473 = vmatpush1.msra.mxu0 %v256
    %474 = vmatprep.subr.mxu0 0.0
    %475 = vmatpush1.msra.mxu0 %v257
    %476 = vmatprep.subr.mxu0 0.0
    %477 = vmatpush1.msra.mxu0 %v258
    %478 = vmatprep.subr.mxu0 0.0
    %479 = vmatpush1.msra.mxu0 %v259
    %480 = vmatprep.subr.mxu0 0.0
    %481 = vmatpush1.msra.mxu0 %v260
    %482 = vmatprep.subr.mxu0 0.0
    %483 = vmatpush1.msra.mxu0 %v468
    %484 = vmatprep.subr.mxu0 0.0
    %485 = vmatpush1.msra.mxu0 0.0
    %486 = vmatprep.subr.mxu0 0.0
    %487 = vmatpush1.msra.mxu0 0.0
    %488 = vmatprep.subr.mxu0 0.0
    %489 = vmatpush1.msra.mxu0 0.0
    %490 = vmatprep.subr.mxu0 0.0
    %491 = vmatpush1.msra.mxu0 0.0
    %492 = vmatprep.subr.mxu0 0.0
    %493 = vmatpush1.msra.mxu0 0.0
    %494 = vmatprep.subr.mxu0 0.0
    %495 = vmatpush1.msra.mxu0 0.0
    %496 = vmatprep.subr.mxu0 0.0
    %497 = vmatpush1.msra.mxu0 0.0
    %498 = vmatprep.subr.mxu0 0.0
    %499 = vmatpush1.msra.mxu0 0.0
    %500 = vmatprep.subr.mxu0 0.0
    %501 = vmatpush1.msra.mxu0 0.0
    %502 = vmatprep.subr.mxu0 0.0
    %503 = vmatpush1.msra.mxu0 0.0
    %504 = vmatprep.subr.mxu0 0.0
    %505 = vmatpush1.msra.mxu0 0.0
    %506 = vmatprep.subr.mxu0 0.0
    %507 = vmatpush1.msra.mxu0 0.0
    %508 = vmatprep.subr.mxu0 0.0
    %509 = vmatpush1.msra.mxu0 0.0
    %510 = vmatprep.subr.mxu0 0.0
    %511 = vmatpush1.msra.mxu0 0.0
    %512 = vmatprep.subr.mxu0 0.0
    %513 = vmatpush1.msra.mxu0 0.0
    %514 = vmatprep.subr.mxu0 0.0
    %515 = vmatpush1.msra.mxu0 0.0
    %516 = vmatprep.subr.mxu0 0.0
    %517 = vmatpush1.msra.mxu0 0.0
    %518 = vmatprep.subr.mxu0 0.0
    %519 = vmatpush1.msra.mxu0 0.0
    %520 = vmatprep.subr.mxu0 0.0
    %521 = vmatpush1.msra.mxu0 0.0
    %522 = vmatprep.subr.mxu0 0.0
    %523 = vmatpush1.msra.mxu0 0.0
    %524 = vmatprep.subr.mxu0 0.0
    %525 = vmatpush1.msra.mxu0 0.0
    %526 = vmatprep.subr.mxu0 0.0
    %527 = vmatpush1.msra.mxu0 0.0
    %528 = vmatprep.subr.mxu0 0.0
    %529 = vmatpush1.msra.mxu0 0.0
    %530 = vmatprep.subr.mxu0 0.0
    %531 = vmatpush1.msra.mxu0 0.0
    %532 = vmatprep.subr.mxu0 0.0
    %533 = vmatpush1.msra.mxu0 0.0
    %534 = vmatprep.mubr.f32.mxu0 0.0
    %535 = vmatmul.mubr.f32.gmra.mrb[0].mxu0 %v271
    %v536 = vpop.f32.mrb[0].mxu0
    %v537 = vadd.f32 %v389, %v536
    %v538 = vpop.f32.mrb[0].mxu0
    %539 = vmatprep.mubr.f32.mxu0 0.0
    %540 = vmatmul.mubr.f32.gmra.mrb[0].mxu0 %v274
    %v541 = vpop.f32.mrb[0].mxu0
    %v542 = vadd.f32 %v394, %v541
    %v543 = vpop.f32.mrb[0].mxu0
    %544 = vmatprep.mubr.f32.mxu0 0.0
    %545 = vmatmul.mubr.f32.gmra.mrb[0].mxu0 %v277
    %v546 = vpop.f32.mrb[0].mxu0
    %v547 = vadd.f32 %v399, %v546
    %v548 = vpop.f32.mrb[0].mxu0
    %549 = vmatprep.mubr.f32.mxu0 0.0
    %550 = vmatmul.mubr.f32.gmra.mrb[0].mxu0 %v280
    %v551 = vpop.f32.mrb[0].mxu0
    %v552 = vadd.f32 %v404, %v551
    %v553 = vpop.f32.mrb[0].mxu0
    %554 = vmatprep.mubr.f32.mxu0 0.0
    %555 = vmatmul.mubr.f32.gmra.mrb[0].mxu0 %v283
    %v556 = vpop.f32.mrb[0].mxu0
    %v557 = vadd.f32 %v409, %v556
    %v558 = vpop.f32.mrb[0].mxu0
    %559 = vmatprep.mubr.f32.mxu0 0.0
    %560 = vmatmul.mubr.f32.gmra.mrb[0].mxu0 %v286
    %v561 = vpop.f32.mrb[0].mxu0
    %v562 = vadd.f32 %v414, %v561
    %v563 = vpop.f32.mrb[0].mxu0
    %564 = vmatprep.mubr.f32.mxu0 0.0
    %565 = vmatmul.mubr.f32.gmra.mrb[0].mxu0 %v289
    %v566 = vpop.f32.mrb[0].mxu0
    %v567 = vadd.f32 %v419, %v566
    %v568 = vpop.f32.mrb[0].mxu0
    %569 = vmatprep.mubr.f32.mxu0 0.0
    %570 = vmatmul.mubr.f32.gmra.mrb[0].mxu0 %v292
    %v571 = vpop.f32.mrb[0].mxu0
    %v572 = vadd.f32 %v424, %v571
    %v573 = vpop.f32.mrb[0].mxu0
    %574 = vmatprep.mubr.f32.mxu0 0.0
    %575 = vmatmul.mubr.f32.gmra.mrb[0].mxu0 %v295
    %v576 = vpop.f32.mrb[0].mxu0
    %v577 = vadd.f32 %v429, %v576
    %v578 = vpop.f32.mrb[0].mxu0
    %579 = vmatprep.mubr.f32.mxu0 0.0
    %580 = vmatmul.mubr.f32.gmra.mrb[0].mxu0 %v298
    %v581 = vpop.f32.mrb[0].mxu0
    %v582 = vadd.f32 %v434, %v581
    %v583 = vpop.f32.mrb[0].mxu0
    %584 = vmatprep.mubr.f32.mxu0 0.0
    %585 = vmatmul.mubr.f32.gmra.mrb[0].mxu0 %v301
    %v586 = vpop.f32.mrb[0].mxu0
    %v587 = vadd.f32 %v439, %v586
    %v588 = vpop.f32.mrb[0].mxu0
    %589 = vmatprep.mubr.f32.mxu0 0.0
    %590 = vmatmul.mubr.f32.gmra.mrb[0].mxu0 %v304
    %v591 = vpop.f32.mrb[0].mxu0
    %v592 = vadd.f32 %v444, %v591
    %v593 = vpop.f32.mrb[0].mxu0
    %594 = vmatprep.mubr.f32.mxu0 0.0
    %595 = vmatmul.mubr.f32.gmra.mrb[0].mxu0 %v307
    %v596 = vpop.f32.mrb[0].mxu0
    %v597 = vadd.f32 %v449, %v596
    %v598 = vpop.f32.mrb[0].mxu0
    %599 = vmatprep.mubr.f32.mxu0 0.0
    %600 = vmatmul.mubr.f32.gmra.mrb[0].mxu0 %v310
    %v601 = vpop.f32.mrb[0].mxu0
    %v602 = vadd.f32 %v454, %v601
    %v603 = vpop.f32.mrb[0].mxu0
    %604 = vmatprep.mubr.f32.mxu0 0.0
    %605 = vmatmul.mubr.f32.gmra.mrb[0].mxu0 %v313
    %v606 = vpop.f32.mrb[0].mxu0
    %v607 = vadd.f32 %v459, %v606
    %v608 = vpop.f32.mrb[0].mxu0
    %609 = vmatprep.mubr.f32.mxu0 0.0
    %610 = vmatmul.mubr.f32.gmra.mrb[0].mxu0 %v316
    %v611 = vpop.f32.mrb[0].mxu0
    %v612 = vadd.f32 %v464, %v611
    %v613 = vpop.f32.mrb[0].mxu0
    %614 = vdwg.mxu0
    %v615 = vld [vmem:[%s3] sm:$0xff]
    %v616 = vld [vmem:[%s3 + $0x8] sm:$0xff]
    %v617 = vld [vmem:[%s3 + $0x10] sm:$0xff]
    %v618 = vld [vmem:[%s3 + $0x18] sm:$0xff]
    %v619 = vld [vmem:[%s3 + $0x20] sm:$0xff]
    %v620 = vld [vmem:[%s3 + $0x28] sm:$0xff]
    %v621 = vld [vmem:[%s3 + $0x30] sm:$0x3]
    %v622 = vpack.c.bf16 %v616, %v615
    %v623 = vpack.c.bf16 %v618, %v617
    %v624 = vpack.c.bf16 %v620, %v619
    %v625 = vpack.c.bf16 %v621, %v621
    %v626 = vunpack.c.l.bf16 %v622
    %v627 = vunpack.c.h.bf16 %v622
    %v628 = vunpack.c.l.bf16 %v623
    %v629 = vunpack.c.h.bf16 %v623
    %v630 = vunpack.c.l.bf16 %v624
    %v631 = vunpack.c.h.bf16 %v624
    %v632 = vunpack.c.l.bf16 %v625
    %v633 = vsub.f32 %v615, %v626
    %v634 = vsub.f32 %v616, %v627
    %v635 = vsub.f32 %v617, %v628
    %v636 = vsub.f32 %v618, %v629
    %v637 = vsub.f32 %v619, %v630
    %v638 = vsub.f32 %v620, %v631
    %v639 = vsub.f32 %v621, %v632
    %v641 = vsel %vm269, %v228, 0
    %v644 = vsel %vm269, %v229, 0
    %v647 = vsel %vm269, %v230, 0
    %v650 = vsel %vm269, %v231, 0
    %v653 = vsel %vm269, %v232, 0
    %v656 = vsel %vm269, %v233, 0
    %v659 = vsel %vm269, %v234, 0
    %v662 = vsel %vm269, %v235, 0
    %v665 = vsel %vm269, %v236, 0
    %v668 = vsel %vm269, %v237, 0
    %v671 = vsel %vm269, %v238, 0
    %v674 = vsel %vm269, %v239, 0
    %v677 = vsel %vm269, %v240, 0
    %v680 = vsel %vm269, %v241, 0
    %v683 = vsel %vm269, %v242, 0
    %v686 = vsel %vm269, %v243, 0
    %v689 = vsel %vm318, %v639, 0
    %691 = vmatprep.subr.mxu0 0.0
    %692 = vmatpush1.msra.mxu0 %v633
    %693 = vmatprep.subr.mxu0 0.0
    %694 = vmatpush1.msra.mxu0 %v634
    %695 = vmatprep.subr.mxu0 0.0
    %696 = vmatpush1.msra.mxu0 %v635
    %697 = vmatprep.subr.mxu0 0.0
    %698 = vmatpush1.msra.mxu0 %v636
    %699 = vmatprep.subr.mxu0 0.0
    %700 = vmatpush1.msra.mxu0 %v637
    %701 = vmatprep.subr.mxu0 0.0
    %702 = vmatpush1.msra.mxu0 %v638
    %703 = vmatprep.subr.mxu0 0.0
    %704 = vmatpush1.msra.mxu0 %v689
    %705 = vmatprep.subr.mxu0 0.0
    %706 = vmatpush1.msra.mxu0 0.0
    %707 = vmatprep.subr.mxu0 0.0
    %708 = vmatpush1.msra.mxu0 0.0
    %709 = vmatprep.subr.mxu0 0.0
    %710 = vmatpush1.msra.mxu0 0.0
    %711 = vmatprep.subr.mxu0 0.0
    %712 = vmatpush1.msra.mxu0 0.0
    %713 = vmatprep.subr.mxu0 0.0
    %714 = vmatpush1.msra.mxu0 0.0
    %715 = vmatprep.subr.mxu0 0.0
    %716 = vmatpush1.msra.mxu0 0.0
    %717 = vmatprep.subr.mxu0 0.0
    %718 = vmatpush1.msra.mxu0 0.0
    %719 = vmatprep.subr.mxu0 0.0
    %720 = vmatpush1.msra.mxu0 0.0
    %721 = vmatprep.subr.mxu0 0.0
    %722 = vmatpush1.msra.mxu0 0.0
    %723 = vmatprep.subr.mxu0 0.0
    %724 = vmatpush1.msra.mxu0 0.0
    %725 = vmatprep.subr.mxu0 0.0
    %726 = vmatpush1.msra.mxu0 0.0
    %727 = vmatprep.subr.mxu0 0.0
    %728 = vmatpush1.msra.mxu0 0.0
    %729 = vmatprep.subr.mxu0 0.0
    %730 = vmatpush1.msra.mxu0 0.0
    %731 = vmatprep.subr.mxu0 0.0
    %732 = vmatpush1.msra.mxu0 0.0
    %733 = vmatprep.subr.mxu0 0.0
    %734 = vmatpush1.msra.mxu0 0.0
    %735 = vmatprep.subr.mxu0 0.0
    %736 = vmatpush1.msra.mxu0 0.0
    %737 = vmatprep.subr.mxu0 0.0
    %738 = vmatpush1.msra.mxu0 0.0
    %739 = vmatprep.subr.mxu0 0.0
    %740 = vmatpush1.msra.mxu0 0.0
    %741 = vmatprep.subr.mxu0 0.0
    %742 = vmatpush1.msra.mxu0 0.0
    %743 = vmatprep.subr.mxu0 0.0
    %744 = vmatpush1.msra.mxu0 0.0
    %745 = vmatprep.subr.mxu0 0.0
    %746 = vmatpush1.msra.mxu0 0.0
    %747 = vmatprep.subr.mxu0 0.0
    %748 = vmatpush1.msra.mxu0 0.0
    %749 = vmatprep.subr.mxu0 0.0
    %750 = vmatpush1.msra.mxu0 0.0
    %751 = vmatprep.subr.mxu0 0.0
    %752 = vmatpush1.msra.mxu0 0.0
    %753 = vmatprep.subr.mxu0 0.0
    %754 = vmatpush1.msra.mxu0 0.0
    %755 = vmatprep.mubr.f32.mxu0 0.0
    %756 = vmatmul.mubr.f32.gmra.mrb[0].mxu0 %v641
    %v757 = vpop.f32.mrb[0].mxu0
    %v758 = vadd.f32 0.0, %v757
    %v759 = vpop.f32.mrb[0].mxu0
    %760 = vmatprep.mubr.f32.mxu0 0.0
    %761 = vmatmul.mubr.f32.gmra.mrb[0].mxu0 %v644
    %v762 = vpop.f32.mrb[0].mxu0
    %v763 = vadd.f32 0.0, %v762
    %v764 = vpop.f32.mrb[0].mxu0
    %765 = vmatprep.mubr.f32.mxu0 0.0
    %766 = vmatmul.mubr.f32.gmra.mrb[0].mxu0 %v647
    %v767 = vpop.f32.mrb[0].mxu0
    %v768 = vadd.f32 0.0, %v767
    %v769 = vpop.f32.mrb[0].mxu0
    %770 = vmatprep.mubr.f32.mxu0 0.0
    %771 = vmatmul.mubr.f32.gmra.mrb[0].mxu0 %v650
    %v772 = vpop.f32.mrb[0].mxu0
    %v773 = vadd.f32 0.0, %v772
    %v774 = vpop.f32.mrb[0].mxu0
    %775 = vmatprep.mubr.f32.mxu0 0.0
    %776 = vmatmul.mubr.f32.gmra.mrb[0].mxu0 %v653
    %v777 = vpop.f32.mrb[0].mxu0
    %v778 = vadd.f32 0.0, %v777
    %v779 = vpop.f32.mrb[0].mxu0
    %780 = vmatprep.mubr.f32.mxu0 0.0
    %781 = vmatmul.mubr.f32.gmra.mrb[0].mxu0 %v656
    %v782 = vpop.f32.mrb[0].mxu0
    %v783 = vadd.f32 0.0, %v782
    %v784 = vpop.f32.mrb[0].mxu0
    %785 = vmatprep.mubr.f32.mxu0 0.0
    %786 = vmatmul.mubr.f32.gmra.mrb[0].mxu0 %v659
    %v787 = vpop.f32.mrb[0].mxu0
    %v788 = vadd.f32 0.0, %v787
    %v789 = vpop.f32.mrb[0].mxu0
    %790 = vmatprep.mubr.f32.mxu0 0.0
    %791 = vmatmul.mubr.f32.gmra.mrb[0].mxu0 %v662
    %v792 = vpop.f32.mrb[0].mxu0
    %v793 = vadd.f32 0.0, %v792
    %v794 = vpop.f32.mrb[0].mxu0
    %795 = vmatprep.mubr.f32.mxu0 0.0
    %796 = vmatmul.mubr.f32.gmra.mrb[0].mxu0 %v665
    %v797 = vpop.f32.mrb[0].mxu0
    %v798 = vadd.f32 0.0, %v797
    %v799 = vpop.f32.mrb[0].mxu0
    %800 = vmatprep.mubr.f32.mxu0 0.0
    %801 = vmatmul.mubr.f32.gmra.mrb[0].mxu0 %v668
    %v802 = vpop.f32.mrb[0].mxu0
    %v803 = vadd.f32 0.0, %v802
    %v804 = vpop.f32.mrb[0].mxu0
    %805 = vmatprep.mubr.f32.mxu0 0.0
    %806 = vmatmul.mubr.f32.gmra.mrb[0].mxu0 %v671
    %v807 = vpop.f32.mrb[0].mxu0
    %v808 = vadd.f32 0.0, %v807
    %v809 = vpop.f32.mrb[0].mxu0
    %810 = vmatprep.mubr.f32.mxu0 0.0
    %811 = vmatmul.mubr.f32.gmra.mrb[0].mxu0 %v674
    %v812 = vpop.f32.mrb[0].mxu0
    %v813 = vadd.f32 0.0, %v812
    %v814 = vpop.f32.mrb[0].mxu0
    %815 = vmatprep.mubr.f32.mxu0 0.0
    %816 = vmatmul.mubr.f32.gmra.mrb[0].mxu0 %v677
    %v817 = vpop.f32.mrb[0].mxu0
    %v818 = vadd.f32 0.0, %v817
    %v819 = vpop.f32.mrb[0].mxu0
    %820 = vmatprep.mubr.f32.mxu0 0.0
    %821 = vmatmul.mubr.f32.gmra.mrb[0].mxu0 %v680
    %v822 = vpop.f32.mrb[0].mxu0
    %v823 = vadd.f32 0.0, %v822
    %v824 = vpop.f32.mrb[0].mxu0
    %825 = vmatprep.mubr.f32.mxu0 0.0
    %826 = vmatmul.mubr.f32.gmra.mrb[0].mxu0 %v683
    %v827 = vpop.f32.mrb[0].mxu0
    %v828 = vadd.f32 0.0, %v827
    %v829 = vpop.f32.mrb[0].mxu0
    %830 = vmatprep.mubr.f32.mxu0 0.0
    %831 = vmatmul.mubr.f32.gmra.mrb[0].mxu0 %v686
    %v832 = vpop.f32.mrb[0].mxu0
    %v833 = vadd.f32 0.0, %v832
    %v834 = vpop.f32.mrb[0].mxu0
    %835 = vdwg.mxu0
    %v837 = vsel %vm318, %v632, 0
    %839 = vmatprep.subr.mxu0 0.0
    %840 = vmatpush1.msra.mxu0 %v626
    %841 = vmatprep.subr.mxu0 0.0
    %842 = vmatpush1.msra.mxu0 %v627
    %843 = vmatprep.subr.mxu0 0.0
    %844 = vmatpush1.msra.mxu0 %v628
    %845 = vmatprep.subr.mxu0 0.0
    %846 = vmatpush1.msra.mxu0 %v629
    %847 = vmatprep.subr.mxu0 0.0
    %848 = vmatpush1.msra.mxu0 %v630
    %849 = vmatprep.subr.mxu0 0.0
    %850 = vmatpush1.msra.mxu0 %v631
    %851 = vmatprep.subr.mxu0 0.0
    %852 = vmatpush1.msra.mxu0 %v837
    %853 = vmatprep.subr.mxu0 0.0
    %854 = vmatpush1.msra.mxu0 0.0
    %855 = vmatprep.subr.mxu0 0.0
    %856 = vmatpush1.msra.mxu0 0.0
    %857 = vmatprep.subr.mxu0 0.0
    %858 = vmatpush1.msra.mxu0 0.0
    %859 = vmatprep.subr.mxu0 0.0
    %860 = vmatpush1.msra.mxu0 0.0
    %861 = vmatprep.subr.mxu0 0.0
    %862 = vmatpush1.msra.mxu0 0.0
    %863 = vmatprep.subr.mxu0 0.0
    %864 = vmatpush1.msra.mxu0 0.0
    %865 = vmatprep.subr.mxu0 0.0
    %866 = vmatpush1.msra.mxu0 0.0
    %867 = vmatprep.subr.mxu0 0.0
    %868 = vmatpush1.msra.mxu0 0.0
    %869 = vmatprep.subr.mxu0 0.0
    %870 = vmatpush1.msra.mxu0 0.0
    %871 = vmatprep.subr.mxu0 0.0
    %872 = vmatpush1.msra.mxu0 0.0
    %873 = vmatprep.subr.mxu0 0.0
    %874 = vmatpush1.msra.mxu0 0.0
    %875 = vmatprep.subr.mxu0 0.0
    %876 = vmatpush1.msra.mxu0 0.0
    %877 = vmatprep.subr.mxu0 0.0
    %878 = vmatpush1.msra.mxu0 0.0
    %879 = vmatprep.subr.mxu0 0.0
    %880 = vmatpush1.msra.mxu0 0.0
    %881 = vmatprep.subr.mxu0 0.0
    %882 = vmatpush1.msra.mxu0 0.0
    %883 = vmatprep.subr.mxu0 0.0
    %884 = vmatpush1.msra.mxu0 0.0
    %885 = vmatprep.subr.mxu0 0.0
    %886 = vmatpush1.msra.mxu0 0.0
    %887 = vmatprep.subr.mxu0 0.0
    %888 = vmatpush1.msra.mxu0 0.0
    %889 = vmatprep.subr.mxu0 0.0
    %890 = vmatpush1.msra.mxu0 0.0
    %891 = vmatprep.subr.mxu0 0.0
    %892 = vmatpush1.msra.mxu0 0.0
    %893 = vmatprep.subr.mxu0 0.0
    %894 = vmatpush1.msra.mxu0 0.0
    %895 = vmatprep.subr.mxu0 0.0
    %896 = vmatpush1.msra.mxu0 0.0
    %897 = vmatprep.subr.mxu0 0.0
    %898 = vmatpush1.msra.mxu0 0.0
    %899 = vmatprep.subr.mxu0 0.0
    %900 = vmatpush1.msra.mxu0 0.0
    %901 = vmatprep.subr.mxu0 0.0
    %902 = vmatpush1.msra.mxu0 0.0
    %903 = vmatprep.mubr.f32.mxu0 0.0
    %904 = vmatmul.mubr.f32.gmra.mrb[0].mxu0 %v641
    %v905 = vpop.f32.mrb[0].mxu0
    %v906 = vadd.f32 %v758, %v905
    %v907 = vpop.f32.mrb[0].mxu0
    %908 = vmatprep.mubr.f32.mxu0 0.0
    %909 = vmatmul.mubr.f32.gmra.mrb[0].mxu0 %v644
    %v910 = vpop.f32.mrb[0].mxu0
    %v911 = vadd.f32 %v763, %v910
    %v912 = vpop.f32.mrb[0].mxu0
    %913 = vmatprep.mubr.f32.mxu0 0.0
    %914 = vmatmul.mubr.f32.gmra.mrb[0].mxu0 %v647
    %v915 = vpop.f32.mrb[0].mxu0
    %v916 = vadd.f32 %v768, %v915
    %v917 = vpop.f32.mrb[0].mxu0
    %918 = vmatprep.mubr.f32.mxu0 0.0
    %919 = vmatmul.mubr.f32.gmra.mrb[0].mxu0 %v650
    %v920 = vpop.f32.mrb[0].mxu0
    %v921 = vadd.f32 %v773, %v920
    %v922 = vpop.f32.mrb[0].mxu0
    %923 = vmatprep.mubr.f32.mxu0 0.0
    %924 = vmatmul.mubr.f32.gmra.mrb[0].mxu0 %v653
    %v925 = vpop.f32.mrb[0].mxu0
    %v926 = vadd.f32 %v778, %v925
    %v927 = vpop.f32.mrb[0].mxu0
    %928 = vmatprep.mubr.f32.mxu0 0.0
    %929 = vmatmul.mubr.f32.gmra.mrb[0].mxu0 %v656
    %v930 = vpop.f32.mrb[0].mxu0
    %v931 = vadd.f32 %v783, %v930
    %v932 = vpop.f32.mrb[0].mxu0
    %933 = vmatprep.mubr.f32.mxu0 0.0
    %934 = vmatmul.mubr.f32.gmra.mrb[0].mxu0 %v659
    %v935 = vpop.f32.mrb[0].mxu0
    %v936 = vadd.f32 %v788, %v935
    %v937 = vpop.f32.mrb[0].mxu0
    %938 = vmatprep.mubr.f32.mxu0 0.0
    %939 = vmatmul.mubr.f32.gmra.mrb[0].mxu0 %v662
    %v940 = vpop.f32.mrb[0].mxu0
    %v941 = vadd.f32 %v793, %v940
    %v942 = vpop.f32.mrb[0].mxu0
    %943 = vmatprep.mubr.f32.mxu0 0.0
    %944 = vmatmul.mubr.f32.gmra.mrb[0].mxu0 %v665
    %v945 = vpop.f32.mrb[0].mxu0
    %v946 = vadd.f32 %v798, %v945
    %v947 = vpop.f32.mrb[0].mxu0
    %948 = vmatprep.mubr.f32.mxu0 0.0
    %949 = vmatmul.mubr.f32.gmra.mrb[0].mxu0 %v668
    %v950 = vpop.f32.mrb[0].mxu0
    %v951 = vadd.f32 %v803, %v950
    %v952 = vpop.f32.mrb[0].mxu0
    %953 = vmatprep.mubr.f32.mxu0 0.0
    %954 = vmatmul.mubr.f32.gmra.mrb[0].mxu0 %v671
    %v955 = vpop.f32.mrb[0].mxu0
    %v956 = vadd.f32 %v808, %v955
    %v957 = vpop.f32.mrb[0].mxu0
    %958 = vmatprep.mubr.f32.mxu0 0.0
    %959 = vmatmul.mubr.f32.gmra.mrb[0].mxu0 %v674
    %v960 = vpop.f32.mrb[0].mxu0
    %v961 = vadd.f32 %v813, %v960
    %v962 = vpop.f32.mrb[0].mxu0
    %963 = vmatprep.mubr.f32.mxu0 0.0
    %964 = vmatmul.mubr.f32.gmra.mrb[0].mxu0 %v677
    %v965 = vpop.f32.mrb[0].mxu0
    %v966 = vadd.f32 %v818, %v965
    %v967 = vpop.f32.mrb[0].mxu0
    %968 = vmatprep.mubr.f32.mxu0 0.0
    %969 = vmatmul.mubr.f32.gmra.mrb[0].mxu0 %v680
    %v970 = vpop.f32.mrb[0].mxu0
    %v971 = vadd.f32 %v823, %v970
    %v972 = vpop.f32.mrb[0].mxu0
    %973 = vmatprep.mubr.f32.mxu0 0.0
    %974 = vmatmul.mubr.f32.gmra.mrb[0].mxu0 %v683
    %v975 = vpop.f32.mrb[0].mxu0
    %v976 = vadd.f32 %v828, %v975
    %v977 = vpop.f32.mrb[0].mxu0
    %978 = vmatprep.mubr.f32.mxu0 0.0
    %979 = vmatmul.mubr.f32.gmra.mrb[0].mxu0 %v686
    %v980 = vpop.f32.mrb[0].mxu0
    %v981 = vadd.f32 %v833, %v980
    %v982 = vpop.f32.mrb[0].mxu0
    %983 = vdwg.mxu0
    %v984 = vmul.f32 %v537, %v906
    %v985 = vmul.f32 %v542, %v911
    %v986 = vmul.f32 %v547, %v916
    %v987 = vmul.f32 %v552, %v921
    %v988 = vmul.f32 %v557, %v926
    %v989 = vmul.f32 %v562, %v931
    %v990 = vmul.f32 %v567, %v936
    %v991 = vmul.f32 %v572, %v941
    %v992 = vmul.f32 %v577, %v946
    %v993 = vmul.f32 %v582, %v951
    %v994 = vmul.f32 %v587, %v956
    %v995 = vmul.f32 %v592, %v961
    %v996 = vmul.f32 %v597, %v966
    %v997 = vmul.f32 %v602, %v971
    %v998 = vmul.f32 %v607, %v976
    %v999 = vmul.f32 %v612, %v981
    %v1000 = vpack.c.bf16 %v985, %v984
    %v1001 = vpack.c.bf16 %v987, %v986
    %v1002 = vpack.c.bf16 %v989, %v988
    %v1003 = vpack.c.bf16 %v991, %v990
    %v1004 = vpack.c.bf16 %v993, %v992
    %v1005 = vpack.c.bf16 %v995, %v994
    %v1006 = vpack.c.bf16 %v997, %v996
    %v1007 = vpack.c.bf16 %v999, %v998
    %v1008 = vunpack.c.l.bf16 %v1000
    %v1009 = vunpack.c.h.bf16 %v1000
    %v1010 = vunpack.c.l.bf16 %v1001
    %v1011 = vunpack.c.h.bf16 %v1001
    %v1012 = vunpack.c.l.bf16 %v1002
    %v1013 = vunpack.c.h.bf16 %v1002
    %v1014 = vunpack.c.l.bf16 %v1003
    %v1015 = vunpack.c.h.bf16 %v1003
    %v1016 = vunpack.c.l.bf16 %v1004
    %v1017 = vunpack.c.h.bf16 %v1004
    %v1018 = vunpack.c.l.bf16 %v1005
    %v1019 = vunpack.c.h.bf16 %v1005
    %v1020 = vunpack.c.l.bf16 %v1006
    %v1021 = vunpack.c.h.bf16 %v1006
    %v1022 = vunpack.c.l.bf16 %v1007
    %v1023 = vunpack.c.h.bf16 %v1007
    %v1024 = vsub.f32 %v984, %v1008
    %v1025 = vsub.f32 %v985, %v1009
    %v1026 = vsub.f32 %v986, %v1010
    %v1027 = vsub.f32 %v987, %v1011
    %v1028 = vsub.f32 %v988, %v1012
    %v1029 = vsub.f32 %v989, %v1013
    %v1030 = vsub.f32 %v990, %v1014
    %v1031 = vsub.f32 %v991, %v1015
    %v1032 = vsub.f32 %v992, %v1016
    %v1033 = vsub.f32 %v993, %v1017
    %v1034 = vsub.f32 %v994, %v1018
    %v1035 = vsub.f32 %v995, %v1019
    %v1036 = vsub.f32 %v996, %v1020
    %v1037 = vsub.f32 %v997, %v1021
    %v1038 = vsub.f32 %v998, %v1022
    %v1039 = vsub.f32 %v999, %v1023
    %vm1040 = vcmask 277504
    %v1042 = vsel %vm1040, 1.0, 0
    %v1045 = vsel %vm1040, %v1024, 0
    %v1048 = vsel %vm1040, %v1025, 0
    %v1051 = vsel %vm1040, %v1026, 0
    %v1054 = vsel %vm1040, %v1027, 0
    %v1057 = vsel %vm1040, %v1028, 0
    %v1060 = vsel %vm1040, %v1029, 0
    %v1063 = vsel %vm1040, %v1030, 0
    %v1066 = vsel %vm1040, %v1031, 0
    %v1069 = vsel %vm1040, %v1032, 0
    %v1072 = vsel %vm1040, %v1033, 0
    %v1075 = vsel %vm1040, %v1034, 0
    %v1078 = vsel %vm1040, %v1035, 0
    %v1081 = vsel %vm1040, %v1036, 0
    %v1084 = vsel %vm1040, %v1037, 0
    %v1087 = vsel %vm1040, %v1038, 0
    %v1090 = vsel %vm1040, %v1039, 0
    %1092 = vmatprep.subr.mxu0 0.0
    %1093 = vmatpush1.xpose.msra.mxu0 %v1045
    %1094 = vmatprep.subr.mxu0 0.0
    %1095 = vmatpush1.xpose.msra.mxu0 %v1048
    %1096 = vmatprep.subr.mxu0 0.0
    %1097 = vmatpush1.xpose.msra.mxu0 %v1051
    %1098 = vmatprep.subr.mxu0 0.0
    %1099 = vmatpush1.xpose.msra.mxu0 %v1054
    %1100 = vmatprep.subr.mxu0 0.0
    %1101 = vmatpush1.xpose.msra.mxu0 %v1057
    %1102 = vmatprep.subr.mxu0 0.0
    %1103 = vmatpush1.xpose.msra.mxu0 %v1060
    %1104 = vmatprep.subr.mxu0 0.0
    %1105 = vmatpush1.xpose.msra.mxu0 %v1063
    %1106 = vmatprep.subr.mxu0 0.0
    %1107 = vmatpush1.xpose.msra.mxu0 %v1066
    %1108 = vmatprep.subr.mxu0 0.0
    %1109 = vmatpush1.xpose.msra.mxu0 %v1069
    %1110 = vmatprep.subr.mxu0 0.0
    %1111 = vmatpush1.xpose.msra.mxu0 %v1072
    %1112 = vmatprep.subr.mxu0 0.0
    %1113 = vmatpush1.xpose.msra.mxu0 %v1075
    %1114 = vmatprep.subr.mxu0 0.0
    %1115 = vmatpush1.xpose.msra.mxu0 %v1078
    %1116 = vmatprep.subr.mxu0 0.0
    %1117 = vmatpush1.xpose.msra.mxu0 %v1081
    %1118 = vmatprep.subr.mxu0 0.0
    %1119 = vmatpush1.xpose.msra.mxu0 %v1084
    %1120 = vmatprep.subr.mxu0 0.0
    %1121 = vmatpush1.xpose.msra.mxu0 %v1087
    %1122 = vmatprep.subr.mxu0 0.0
    %1123 = vmatpush1.xpose.msra.mxu0 %v1090
    %1124 = vmatprep.subr.mxu0 0.0
    %1125 = vmatpush1.xpose.msra.mxu0 0.0
    %1126 = vmatprep.subr.mxu0 0.0
    %1127 = vmatpush1.xpose.msra.mxu0 0.0
    %1128 = vmatprep.subr.mxu0 0.0
    %1129 = vmatpush1.xpose.msra.mxu0 0.0
    %1130 = vmatprep.subr.mxu0 0.0
    %1131 = vmatpush1.xpose.msra.mxu0 0.0
    %1132 = vmatprep.subr.mxu0 0.0
    %1133 = vmatpush1.xpose.msra.mxu0 0.0
    %1134 = vmatprep.subr.mxu0 0.0
    %1135 = vmatpush1.xpose.msra.mxu0 0.0
    %1136 = vmatprep.subr.mxu0 0.0
    %1137 = vmatpush1.xpose.msra.mxu0 0.0
    %1138 = vmatprep.subr.mxu0 0.0
    %1139 = vmatpush1.xpose.msra.mxu0 0.0
    %1140 = vmatprep.subr.mxu0 0.0
    %1141 = vmatpush1.xpose.msra.mxu0 0.0
    %1142 = vmatprep.subr.mxu0 0.0
    %1143 = vmatpush1.xpose.msra.mxu0 0.0
    %1144 = vmatprep.subr.mxu0 0.0
    %1145 = vmatpush1.xpose.msra.mxu0 0.0
    %1146 = vmatprep.subr.mxu0 0.0
    %1147 = vmatpush1.xpose.msra.mxu0 0.0
    %1148 = vmatprep.subr.mxu0 0.0
    %1149 = vmatpush1.xpose.msra.mxu0 0.0
    %1150 = vmatprep.subr.mxu0 0.0
    %1151 = vmatpush1.xpose.msra.mxu0 0.0
    %1152 = vmatprep.subr.mxu0 0.0
    %1153 = vmatpush1.xpose.msra.mxu0 0.0
    %1154 = vmatprep.subr.mxu0 0.0
    %1155 = vmatpush1.xpose.msra.mxu0 0.0
    %1156 = vmatprep.mubr.f32.mxu0 0.0
    %1157 = vmatmul.mubr.f32.gmra.mrb[0].mxu0 %v1042
    %v1158 = vpop.f32.mrb[0].mxu0
    %v1159 = vadd.f32 0.0, %v1158
    %v1160 = vpop.f32.mrb[0].mxu0
    %1161 = vdwg.mxu0
    %v1163 = vsel %vm1040, %v1008, 0
    %v1166 = vsel %vm1040, %v1009, 0
    %v1169 = vsel %vm1040, %v1010, 0
    %v1172 = vsel %vm1040, %v1011, 0
    %v1175 = vsel %vm1040, %v1012, 0
    %v1178 = vsel %vm1040, %v1013, 0
    %v1181 = vsel %vm1040, %v1014, 0
    %v1184 = vsel %vm1040, %v1015, 0
    %v1187 = vsel %vm1040, %v1016, 0
    %v1190 = vsel %vm1040, %v1017, 0
    %v1193 = vsel %vm1040, %v1018, 0
    %v1196 = vsel %vm1040, %v1019, 0
    %v1199 = vsel %vm1040, %v1020, 0
    %v1202 = vsel %vm1040, %v1021, 0
    %v1205 = vsel %vm1040, %v1022, 0
    %v1208 = vsel %vm1040, %v1023, 0
    %1210 = vmatprep.subr.mxu0 0.0
    %1211 = vmatpush1.xpose.msra.mxu0 %v1163
    %1212 = vmatprep.subr.mxu0 0.0
    %1213 = vmatpush1.xpose.msra.mxu0 %v1166
    %1214 = vmatprep.subr.mxu0 0.0
    %1215 = vmatpush1.xpose.msra.mxu0 %v1169
    %1216 = vmatprep.subr.mxu0 0.0
    %1217 = vmatpush1.xpose.msra.mxu0 %v1172
    %1218 = vmatprep.subr.mxu0 0.0
    %1219 = vmatpush1.xpose.msra.mxu0 %v1175
    %1220 = vmatprep.subr.mxu0 0.0
    %1221 = vmatpush1.xpose.msra.mxu0 %v1178
    %1222 = vmatprep.subr.mxu0 0.0
    %1223 = vmatpush1.xpose.msra.mxu0 %v1181
    %1224 = vmatprep.subr.mxu0 0.0
    %1225 = vmatpush1.xpose.msra.mxu0 %v1184
    %1226 = vmatprep.subr.mxu0 0.0
    %1227 = vmatpush1.xpose.msra.mxu0 %v1187
    %1228 = vmatprep.subr.mxu0 0.0
    %1229 = vmatpush1.xpose.msra.mxu0 %v1190
    %1230 = vmatprep.subr.mxu0 0.0
    %1231 = vmatpush1.xpose.msra.mxu0 %v1193
    %1232 = vmatprep.subr.mxu0 0.0
    %1233 = vmatpush1.xpose.msra.mxu0 %v1196
    %1234 = vmatprep.subr.mxu0 0.0
    %1235 = vmatpush1.xpose.msra.mxu0 %v1199
    %1236 = vmatprep.subr.mxu0 0.0
    %1237 = vmatpush1.xpose.msra.mxu0 %v1202
    %1238 = vmatprep.subr.mxu0 0.0
    %1239 = vmatpush1.xpose.msra.mxu0 %v1205
    %1240 = vmatprep.subr.mxu0 0.0
    %1241 = vmatpush1.xpose.msra.mxu0 %v1208
    %1242 = vmatprep.subr.mxu0 0.0
    %1243 = vmatpush1.xpose.msra.mxu0 0.0
    %1244 = vmatprep.subr.mxu0 0.0
    %1245 = vmatpush1.xpose.msra.mxu0 0.0
    %1246 = vmatprep.subr.mxu0 0.0
    %1247 = vmatpush1.xpose.msra.mxu0 0.0
    %1248 = vmatprep.subr.mxu0 0.0
    %1249 = vmatpush1.xpose.msra.mxu0 0.0
    %1250 = vmatprep.subr.mxu0 0.0
    %1251 = vmatpush1.xpose.msra.mxu0 0.0
    %1252 = vmatprep.subr.mxu0 0.0
    %1253 = vmatpush1.xpose.msra.mxu0 0.0
    %1254 = vmatprep.subr.mxu0 0.0
    %1255 = vmatpush1.xpose.msra.mxu0 0.0
    %1256 = vmatprep.subr.mxu0 0.0
    %1257 = vmatpush1.xpose.msra.mxu0 0.0
    %1258 = vmatprep.subr.mxu0 0.0
    %1259 = vmatpush1.xpose.msra.mxu0 0.0
    %1260 = vmatprep.subr.mxu0 0.0
    %1261 = vmatpush1.xpose.msra.mxu0 0.0
    %1262 = vmatprep.subr.mxu0 0.0
    %1263 = vmatpush1.xpose.msra.mxu0 0.0
    %1264 = vmatprep.subr.mxu0 0.0
    %1265 = vmatpush1.xpose.msra.mxu0 0.0
    %1266 = vmatprep.subr.mxu0 0.0
    %1267 = vmatpush1.xpose.msra.mxu0 0.0
    %1268 = vmatprep.subr.mxu0 0.0
    %1269 = vmatpush1.xpose.msra.mxu0 0.0
    %1270 = vmatprep.subr.mxu0 0.0
    %1271 = vmatpush1.xpose.msra.mxu0 0.0
    %1272 = vmatprep.subr.mxu0 0.0
    %1273 = vmatpush1.xpose.msra.mxu0 0.0
    %1274 = vmatprep.mubr.f32.mxu0 0.0
    %1275 = vmatmul.mubr.f32.gmra.mrb[0].mxu0 %v1042
    %v1276 = vpop.f32.mrb[0].mxu0
    %v1277 = vadd.f32 %v1159, %v1276
    %v1278 = vpop.f32.mrb[0].mxu0
    %1279 = vdwg.mxu0
    %1280 = vst [vmem:[#allocation2] sm:$0x1] %v1277
    // Predicated region
    $region18: #{tpu_custom_call.1} parent=1 // pred_check
      _
    $region19: #{tpu_custom_call.1} parent=1 // pred_check_branch
      %1282 = sbr.rel (0) target = $region21
    $region20: #{tpu_custom_call.1} parent=1 // pred_region
      %s1284 = ssub.s32 16, 16
      %1285 = vsyncadd [#allocation3], %s1284
      %s1287 = sshll.u32 [#allocation2], 4
      %s1288 = int_to_ptr.vmem [resolvable:$true] %s1287
      %1290 = dma.vmem_to_hbm [thread:$0]  %s1288, 16, %s4, [#allocation3]
    $region21: #{tpu_custom_call.1} parent=1 // pred_fallthru
      _
    // Predicated region
    $region22: #{tpu_custom_call.1} parent=1 // pred_check
      _
    $region23: #{tpu_custom_call.1} parent=1 // pred_check_branch
      %1292 = sbr.rel (0) target = $region25
    $region24: #{tpu_custom_call.1} parent=1 // pred_region
      %1293 = dma.done [#allocation3], 16
    $region25: #{tpu_custom_call.1} parent=1 // pred_fallthru
      _
    %1294 = vsyncpa [#allocation3], 1

</llo_original>
